<compile_context>
chip_gen: v5e
topology: v5e:2x2
jax: 0.10.0
libtpu: 0.0.40
codegen_flags: <defaults>
</compile_context>

<pallas_src>
import functools

import jax
import jax.numpy as jnp
from jax.experimental import pallas as pl
from jax.experimental.pallas import tpu as pltpu


# --------------------------------------------------------------------------- #
# Kernel
# --------------------------------------------------------------------------- #
def _flash_attend_kernel(q_ref, k_ref, v_ref, o_ref,
                         qs_scr, m_scr, l_scr, acc_scr,
                         *, scale, kv_len, block_kv, needs_mask, exp_dtype):
    """One (head-group, q-tile, kv-tile) step of flash attention.

    Block shapes:
      q_ref : (G, Tq, D)   k_ref/v_ref : (G, Tkv, D)   o_ref : (G, Tq, D)
    Scratch (resident across the kv grid axis):
      qs_scr : (G, Tq, D)  q tile pre-multiplied by the softmax scale
      m_scr  : (G, Tq, 1)  running max                        (f32)
      l_scr  : (G, Tq, 1)  running sum of exp                 (f32)
      acc_scr: (G, Tq, D)  un-normalized output accumulator   (f32)
    """
    kv_idx = pl.program_id(2)

    @pl.when(kv_idx == 0)
    def _init():
        # The q block is resident across the whole kv axis, so fold the scale
        # in once per q tile (not once per kv step).
        qs_scr[...] = q_ref[...] * scale
        m_scr[...] = jnp.full(m_scr.shape, -jnp.inf, dtype=m_scr.dtype)
        l_scr[...] = jnp.zeros(l_scr.shape, dtype=l_scr.dtype)
        acc_scr[...] = jnp.zeros(acc_scr.shape, dtype=acc_scr.dtype)

    # (G, Tq, Tkv) scores; operands keep their native (bf16 by default) dtype
    # for full-rate MXU, accumulation in f32.
    s = jnp.einsum('gqd,gkd->gqk', qs_scr[...], k_ref[...],
                   preferred_element_type=jnp.float32)

    if needs_mask:
        # kv columns >= kv_len are sequence padding added by the wrapper.
        col = jax.lax.broadcasted_iota(jnp.int32, s.shape, 2)
        s = jnp.where(col + kv_idx * block_kv < kv_len, s, -1e30)

    m_prev = m_scr[...]
    m_new = jnp.maximum(m_prev, jnp.max(s, axis=-1, keepdims=True))
    alpha = jnp.exp(m_prev - m_new)                       # rescale old stats
    # exp over the biggest tile: bf16 on bf16-EUP chips (v6e/v7x), f32 on v5e.
    p = jnp.exp((s - m_new).astype(exp_dtype))

    l_scr[...] = alpha * l_scr[...] + jnp.sum(
        p, axis=-1, keepdims=True, dtype=jnp.float32)
    acc_scr[...] = alpha * acc_scr[...] + jnp.einsum(
        'gqk,gkd->gqd', p.astype(v_ref.dtype), v_ref[...],
        preferred_element_type=jnp.float32)
    m_scr[...] = m_new

    @pl.when(kv_idx == pl.num_programs(2) - 1)
    def _finalize():
        # Exact division (not approx reciprocal): runs once per q tile, keeps
        # f32 outputs within tight tolerances of the reference.
        o_ref[...] = (acc_scr[...] / l_scr[...]).astype(o_ref.dtype)


# --------------------------------------------------------------------------- #
# Heuristics
# --------------------------------------------------------------------------- #
def _hw_info():
    """Best-effort TPU generation info: (vmem_bytes, bf16_eup, tq_pref, tkv_pref)."""
    vmem = 128 << 20
    bf16_eup = True
    tq_pref, tkv_pref = 512, 512
    try:
        kind = jax.devices()[0].device_kind.lower()
    except Exception:
        kind = ""
    if "v5" in kind and ("lite" in kind or "5e" in kind):
        # v5e: no bf16 VPU/EUP -> keep exp in f32; roofline knee is already
        # near tq ~ 256-512 so no need for bigger q tiles.
        bf16_eup = False
    elif "v6" in kind:
        # v6e: ~918 TF/s vs ~1.4 TB/s HBM -> bigger q tiles to stay off the
        # K/V-restream bandwidth roofline.
        tq_pref = 1024
    elif "v7" in kind or "7x" in kind:
        # v7x: 64 MiB VMEM per TensorCore, 3.2 TB/s HBM -> moderate tiles.
        vmem = 64 << 20
    return vmem, bf16_eup, tq_pref, tkv_pref


def _round_up(x, m):
    return ((x + m - 1) // m) * m


def _pick_seq_tiles(n, tq_pref, tkv_pref):
    """Return (tq, tkv, padded_n) with tq, tkv dividing padded_n.

    Small sequences use a single full-axis tile (no padding, no masking).
    Larger sequences use lane-friendly tiles (multiples of 128) and the
    wrapper pads the sequence up to a tile multiple; the kernel masks the
    padded kv columns.
    """
    if n <= max(tq_pref, tkv_pref):
        return n, n, n
    tq, tkv = tq_pref, tkv_pref          # multiples of 128; min divides max
    np_ = _round_up(n, max(tq, tkv))
    if np_ - n >= tkv:                   # avoid whole fully-padded kv tiles
        tq = tkv = min(tq, tkv)
        np_ = _round_up(n, tkv)
    return tq, tkv, np_


def _choose_head_group(bh, n_q_tiles, tq, tkv, d, in_itemsize, vmem_bytes):
    """Group several (batch, head) slices per grid step.

    g only amortizes the ~0.35 us per-step overhead and enlarges DMAs (it
    does not improve MXU shape), so it is bounded by the transient score-tile
    VMEM budget and by keeping the parallel grid extent even (v7x megacore).
    """
    kv_step_bytes = 2 * tkv * d * in_itemsize          # K + V per kv step
    sim_bytes = tq * tkv * 12                          # s f32 + exp arg + p
    kv_target = 1 << 20
    sim_budget = (4 << 20) if vmem_bytes <= (64 << 20) else (8 << 20)
    g = int(max(1, min(bh,
                       kv_target // max(1, kv_step_bytes),
                       sim_budget // max(1, sim_bytes))))
    while bh % g:
        g -= 1
    # Keep the parallel grid extent even when possible so both v7x
    # TensorCores get work (harmless on single-TC v5e/v6e).
    while g > 1 and ((bh // g) * n_q_tiles) % 2 != 0:
        g -= 1
        while g > 1 and bh % g:
            g -= 1
    return max(1, g)


# --------------------------------------------------------------------------- #
# Wrapper
# --------------------------------------------------------------------------- #
def attend(q, k, v, scale=None, *, compute_dtype=None, q_tile=None, kv_tile=None):
    """Pallas equivalent of Attend.forward (flash=False, dropout=0, eval)."""
    assert q.shape == k.shape == v.shape
    B, H, N, D = q.shape
    out_dtype = q.dtype
    scale_val = float(scale) if scale is not None else float(D) ** -0.5

    vmem_hw, bf16_eup, tq_pref, tkv_pref = _hw_info()
    if q_tile is not None:
        tq_pref = int(q_tile)
    if kv_tile is not None:
        tkv_pref = int(kv_tile)

    if compute_dtype is None:
        # bf16 matmul operands restore full MXU rate and halve streamed K/V
        # bytes; softmax stats / accumulator stay f32 inside the kernel.
        compute_dtype = (jnp.bfloat16 if out_dtype == jnp.dtype(jnp.float32)
                         else out_dtype)
    compute_dtype = jnp.dtype(compute_dtype)
    exp_dtype = (jnp.bfloat16
                 if (compute_dtype == jnp.dtype(jnp.bfloat16) and bf16_eup)
                 else jnp.float32)

    # Collapse batch and heads into a single grid axis.
    BH = B * H
    qf = q.reshape(BH, N, D).astype(compute_dtype)
    kf = k.reshape(BH, N, D).astype(compute_dtype)
    vf = v.reshape(BH, N, D).astype(compute_dtype)

    tq, tkv, Np = _pick_seq_tiles(N, tq_pref, tkv_pref)
    if Np != N:
        pad = ((0, 0), (0, Np - N), (0, 0))
        qf = jnp.pad(qf, pad)
        kf = jnp.pad(kf, pad)
        vf = jnp.pad(vf, pad)

    n_q_tiles = Np // tq
    g = _choose_head_group(BH, n_q_tiles, tq, tkv, D,
                           compute_dtype.itemsize, vmem_hw)
    grid = (BH // g, n_q_tiles, Np // tkv)

    # VMEM budget derived from the actual block / scratch / transient sizes
    # (blocks are double-buffered by the pipeline), with headroom for v7x's
    # 64 MiB physical VMEM.
    in_item = compute_dtype.itemsize
    out_item = jnp.dtype(out_dtype).itemsize
    blk_bytes = g * (tq * D * in_item + 2 * tkv * D * in_item + tq * D * out_item)
    scratch_bytes = g * (2 * tq * 4 + tq * D * 4 + tq * D * in_item)
    interm_bytes = g * tq * tkv * 12
    need = 2 * blk_bytes + scratch_bytes + interm_bytes
    vmem_limit = int(min(max(2 * need, 24 << 20), (vmem_hw * 3) // 4))

    q_spec = pl.BlockSpec((g, tq, D), lambda b, i, j: (b, i, 0))
    kv_spec = pl.BlockSpec((g, tkv, D), lambda b, i, j: (b, j, 0))
    o_spec = pl.BlockSpec((g, tq, D), lambda b, i, j: (b, i, 0))
    # TODO(synk): on v5e, pipeline_mode=pl.Buffered(3) on the k/v specs is a
    # cheap option if profiling shows exposed K/V DMA latency (128 MiB VMEM).

    kernel = functools.partial(
        _flash_attend_kernel,
        scale=scale_val, kv_len=N, block_kv=tkv,
        needs_mask=(Np != N), exp_dtype=exp_dtype)

    out = pl.pallas_call(
        kernel,
        out_shape=jax.ShapeDtypeStruct((BH, Np, D), out_dtype),
        grid_spec=pltpu.PrefetchScalarGridSpec(
            num_scalar_prefetch=0,
            grid=grid,
            in_specs=[q_spec, kv_spec, kv_spec],
            out_specs=o_spec,
            scratch_shapes=[
                pltpu.VMEM((g, tq, D), compute_dtype),   # scaled q tile
                pltpu.VMEM((g, tq, 1), jnp.float32),     # running max
                pltpu.VMEM((g, tq, 1), jnp.float32),     # running sum
                pltpu.VMEM((g, tq, D), jnp.float32),     # output accumulator
            ],
        ),
        compiler_params=pltpu.CompilerParams(
            dimension_semantics=("parallel", "parallel", "arbitrary"),
            vmem_limit_bytes=vmem_limit,
        ),
    )(qf, kf, vf)

    if Np != N:
        out = out[:, :N, :]
    return out.reshape(B, H, N, D)


# --------------------------------------------------------------------------- #
# Reference & tests
# --------------------------------------------------------------------------- #
def _reference(q, k, v, scale=None):
    D = q.shape[-1]
    s = scale if scale is not None else D ** -0.5
    sim = jnp.einsum('bhid,bhjd->bhij',
                     q.astype(jnp.float32), k.astype(jnp.float32)) * s
    attn = jax.nn.softmax(sim, axis=-1)
    return jnp.einsum('bhij,bhjd->bhid', attn, v.astype(jnp.float32))


if __name__ == "__main__":
    # Small shape matching the module's usage (batch, heads, seq, head-dim).
    B, H, N, D = 2, 4, 8, 32
    kq, kk, kv_ = jax.random.split(jax.random.PRNGKey(0), 3)
    q = jax.random.normal(kq, (B, H, N, D), dtype=jnp.float32)
    k = jax.random.normal(kk, (B, H, N, D), dtype=jnp.float32)
    v = jax.random.normal(kv_, (B, H, N, D), dtype=jnp.float32)

    out = jax.block_until_ready(attend(q, k, v))
    ref = _reference(q, k, v)
    assert out.shape == (B, H, N, D)
    assert out.dtype == q.dtype
    assert jnp.allclose(out, ref, atol=3e-2, rtol=3e-2), \
        float(jnp.max(jnp.abs(out - ref)))

    # Larger shape exercising the tiled online softmax (multiple kv grid
    # steps) and a user-provided scale, bf16 compute path.
    B2, H2, N2, D2 = 1, 2, 1024, 64
    kq2, kk2, kv2 = jax.random.split(jax.random.PRNGKey(1), 3)
    q2 = jax.random.normal(kq2, (B2, H2, N2, D2), dtype=jnp.float32)
    k2 = jax.random.normal(kk2, (B2, H2, N2, D2), dtype=jnp.float32)
    v2 = jax.random.normal(kv2, (B2, H2, N2, D2), dtype=jnp.float32)

    out2 = jax.block_until_ready(attend(q2, k2, v2, scale=0.1))
    ref2 = _reference(q2, k2, v2, scale=0.1)
    assert jnp.allclose(out2, ref2, atol=3e-2, rtol=3e-2), \
        float(jnp.max(jnp.abs(out2 - ref2)))

    # Awkward (non-tile-multiple) sequence length: exercises wrapper padding
    # + in-kernel kv masking, on the exact f32 compute path / tight tolerance.
    B3, H3, N3, D3 = 1, 4, 1000, 64
    kq3, kk3, kv3 = jax.random.split(jax.random.PRNGKey(2), 3)
    q3 = jax.random.normal(kq3, (B3, H3, N3, D3), dtype=jnp.float32)
    k3 = jax.random.normal(kk3, (B3, H3, N3, D3), dtype=jnp.float32)
    v3 = jax.random.normal(kv3, (B3, H3, N3, D3), dtype=jnp.float32)

    out3 = jax.block_until_ready(
        attend(q3, k3, v3, compute_dtype=jnp.float32, q_tile=256, kv_tile=256))
    ref3 = _reference(q3, k3, v3)
    assert jnp.allclose(out3, ref3, atol=2e-3, rtol=2e-3), \
        float(jnp.max(jnp.abs(out3 - ref3)))

    # TODO(synk): attn_dropout (nn.Dropout) is identity at p=0.0 / eval; a
    # training-mode dropout would use pltpu.prng_seed + pltpu.prng_random_bits.

    print("KERNEL_OK")
</pallas_src>

<mosaic_0001>
module attributes {stable_mosaic.version = 11 : i64} {
  func.func @_flash_attend_kernel(%arg0: i32, %arg1: i32, %arg2: i32, %arg3: memref<4x8x32xbf16, #tpu.memory_space<vmem>>, %arg4: memref<4x8x32xbf16, #tpu.memory_space<vmem>>, %arg5: memref<4x8x32xbf16, #tpu.memory_space<vmem>>, %arg6: memref<4x8x32xf32, #tpu.memory_space<vmem>>, %arg7: memref<4x8x32xbf16, #tpu.memory_space<vmem>>, %arg8: memref<4x8x1xf32, #tpu.memory_space<vmem>>, %arg9: memref<4x8x1xf32, #tpu.memory_space<vmem>>, %arg10: memref<4x8x32xf32, #tpu.memory_space<vmem>>) attributes {dimension_semantics = [#tpu.dimension_semantics<parallel>, #tpu.dimension_semantics<parallel>, #tpu.dimension_semantics<arbitrary>], iteration_bounds = array<i64: 2, 1, 1>, scalar_prefetch = 0 : i64, scratch_operands = 4 : i64, tpu.core_type = #tpu.core_type<tc>, window_params = [{transform_indices = @transform_0, window_bounds = array<i64: 4, 8, 32>}, {transform_indices = @transform_1, window_bounds = array<i64: 4, 8, 32>}, {transform_indices = @transform_2, window_bounds = array<i64: 4, 8, 32>}, {transform_indices = @transform_3, window_bounds = array<i64: 4, 8, 32>}]} {
    %c0_i32 = arith.constant 0 : i32
    %0 = arith.cmpi eq, %arg2, %c0_i32 : i32
    %1 = arith.extui %0 : i1 to i32
    %c0_i32_0 = arith.constant 0 : i32
    %2 = arith.cmpi ne, %1, %c0_i32_0 : i32
    scf.if %2 {
      %c0_32 = arith.constant 0 : index
      %c0_33 = arith.constant 0 : index
      %c0_34 = arith.constant 0 : index
      %34 = vector.load %arg3[%c0_32, %c0_33, %c0_34] : memref<4x8x32xbf16, #tpu.memory_space<vmem>>, vector<4x8x32xbf16>
      %cst_35 = arith.constant 1.767580e-01 : bf16
      %35 = vector.broadcast %cst_35 : bf16 to vector<4x8x32xbf16>
      %36 = arith.mulf %34, %35 : vector<4x8x32xbf16>
      %c0_36 = arith.constant 0 : index
      %c0_37 = arith.constant 0 : index
      %c0_38 = arith.constant 0 : index
      %37 = vector.load %arg7[%c0_36, %c0_37, %c0_38] : memref<4x8x32xbf16, #tpu.memory_space<vmem>>, vector<4x8x32xbf16>
      tpu.vector_store %arg7[%c0_36, %c0_37, %c0_38], %36 {strides = array<i32>} : memref<4x8x32xbf16, #tpu.memory_space<vmem>>, vector<4x8x32xbf16>,
      %cst_39 = arith.constant 0xFF800000 : f32
      %38 = vector.broadcast %cst_39 : f32 to vector<4x8x1xf32>
      %c0_40 = arith.constant 0 : index
      %c0_41 = arith.constant 0 : index
      %c0_42 = arith.constant 0 : index
      %39 = vector.load %arg8[%c0_40, %c0_41, %c0_42] : memref<4x8x1xf32, #tpu.memory_space<vmem>>, vector<4x8x1xf32>
      tpu.vector_store %arg8[%c0_40, %c0_41, %c0_42], %38 {strides = array<i32>} : memref<4x8x1xf32, #tpu.memory_space<vmem>>, vector<4x8x1xf32>,
      %cst_43 = arith.constant 0.000000e+00 : f32
      %40 = vector.broadcast %cst_43 : f32 to vector<4x8x1xf32>
      %c0_44 = arith.constant 0 : index
      %c0_45 = arith.constant 0 : index
      %c0_46 = arith.constant 0 : index
      %41 = vector.load %arg9[%c0_44, %c0_45, %c0_46] : memref<4x8x1xf32, #tpu.memory_space<vmem>>, vector<4x8x1xf32>
      tpu.vector_store %arg9[%c0_44, %c0_45, %c0_46], %40 {strides = array<i32>} : memref<4x8x1xf32, #tpu.memory_space<vmem>>, vector<4x8x1xf32>,
      %cst_47 = arith.constant 0.000000e+00 : f32
      %42 = vector.broadcast %cst_47 : f32 to vector<4x8x32xf32>
      %c0_48 = arith.constant 0 : index
      %c0_49 = arith.constant 0 : index
      %c0_50 = arith.constant 0 : index
      %43 = vector.load %arg10[%c0_48, %c0_49, %c0_50] : memref<4x8x32xf32, #tpu.memory_space<vmem>>, vector<4x8x32xf32>
      tpu.vector_store %arg10[%c0_48, %c0_49, %c0_50], %42 {strides = array<i32>} : memref<4x8x32xf32, #tpu.memory_space<vmem>>, vector<4x8x32xf32>,
    } else {
    }
    %c0 = arith.constant 0 : index
    %c0_1 = arith.constant 0 : index
    %c0_2 = arith.constant 0 : index
    %3 = vector.load %arg7[%c0, %c0_1, %c0_2] : memref<4x8x32xbf16, #tpu.memory_space<vmem>>, vector<4x8x32xbf16>
    %c0_3 = arith.constant 0 : index
    %c0_4 = arith.constant 0 : index
    %c0_5 = arith.constant 0 : index
    %4 = vector.load %arg4[%c0_3, %c0_4, %c0_5] : memref<4x8x32xbf16, #tpu.memory_space<vmem>>, vector<4x8x32xbf16>
    "tpu.trace_start"() <{level = 10 : i32, message = "gqd,gkd->gqk"}> : () -> ()
    %cst = arith.constant dense<0.000000e+00> : vector<4x8x8xf32>
    %5 = tpu.matmul %3, %4, %cst {dimension_numbers = #tpu.dot_dimension_numbers<[2], [2], [1], [1], [0, 0, 0, 1, 1, 1], [0], [0]>} : vector<4x8x32xbf16>, vector<4x8x32xbf16>, vector<4x8x8xf32> -> vector<4x8x8xf32>
    "tpu.trace_stop"() : () -> ()
    %c0_6 = arith.constant 0 : index
    %c0_7 = arith.constant 0 : index
    %c0_8 = arith.constant 0 : index
    %6 = vector.load %arg8[%c0_6, %c0_7, %c0_8] : memref<4x8x1xf32, #tpu.memory_space<vmem>>, vector<4x8x1xf32>
    %cst_9 = arith.constant dense<0xFF800000> : vector<4x8xf32>
    %7 = vector.multi_reduction <maximumf>, %5, %cst_9 [2] : vector<4x8x8xf32> to vector<4x8xf32>
    %8 = vector.shape_cast %7 : vector<4x8xf32> to vector<4x8x1xf32>
    %9 = arith.maximumf %6, %8 : vector<4x8x1xf32>
    %10 = arith.subf %6, %9 : vector<4x8x1xf32>
    %11 = math.exp %10 : vector<4x8x1xf32>
    %12 = vector.broadcast %9 : vector<4x8x1xf32> to vector<4x8x8xf32>
    %13 = arith.subf %5, %12 : vector<4x8x8xf32>
    %14 = arith.truncf %13 : vector<4x8x8xf32> to vector<4x8x8xbf16>
    %15 = math.exp %14 : vector<4x8x8xbf16>
    %c0_10 = arith.constant 0 : index
    %c0_11 = arith.constant 0 : index
    %c0_12 = arith.constant 0 : index
    %16 = vector.load %arg9[%c0_10, %c0_11, %c0_12] : memref<4x8x1xf32, #tpu.memory_space<vmem>>, vector<4x8x1xf32>
    %17 = arith.mulf %11, %16 : vector<4x8x1xf32>
    %18 = arith.extf %15 : vector<4x8x8xbf16> to vector<4x8x8xf32>
    %cst_13 = arith.constant dense<0.000000e+00> : vector<4x8xf32>
    %19 = vector.multi_reduction <add>, %18, %cst_13 [2] : vector<4x8x8xf32> to vector<4x8xf32>
    %20 = vector.shape_cast %19 : vector<4x8xf32> to vector<4x8x1xf32>
    %21 = arith.addf %17, %20 : vector<4x8x1xf32>
    %c0_14 = arith.constant 0 : index
    %c0_15 = arith.constant 0 : index
    %c0_16 = arith.constant 0 : index
    %22 = vector.load %arg9[%c0_14, %c0_15, %c0_16] : memref<4x8x1xf32, #tpu.memory_space<vmem>>, vector<4x8x1xf32>
    tpu.vector_store %arg9[%c0_14, %c0_15, %c0_16], %21 {strides = array<i32>} : memref<4x8x1xf32, #tpu.memory_space<vmem>>, vector<4x8x1xf32>,
    %c0_17 = arith.constant 0 : index
    %c0_18 = arith.constant 0 : index
    %c0_19 = arith.constant 0 : index
    %23 = vector.load %arg10[%c0_17, %c0_18, %c0_19] : memref<4x8x32xf32, #tpu.memory_space<vmem>>, vector<4x8x32xf32>
    %24 = vector.broadcast %11 : vector<4x8x1xf32> to vector<4x8x32xf32>
    %25 = arith.mulf %24, %23 : vector<4x8x32xf32>
    %c0_20 = arith.constant 0 : index
    %c0_21 = arith.constant 0 : index
    %c0_22 = arith.constant 0 : index
    %26 = vector.load %arg5[%c0_20, %c0_21, %c0_22] : memref<4x8x32xbf16, #tpu.memory_space<vmem>>, vector<4x8x32xbf16>
    "tpu.trace_start"() <{level = 10 : i32, message = "gqk,gkd->gqd"}> : () -> ()
    %cst_23 = arith.constant dense<0.000000e+00> : vector<4x8x32xf32>
    %27 = tpu.matmul %15, %26, %cst_23 {dimension_numbers = #tpu.dot_dimension_numbers<[2], [1], [1], [2], [0, 0, 0, 1, 1, 2], [0], [0]>} : vector<4x8x8xbf16>, vector<4x8x32xbf16>, vector<4x8x32xf32> -> vector<4x8x32xf32>
    "tpu.trace_stop"() : () -> ()
    %28 = arith.addf %25, %27 : vector<4x8x32xf32>
    %c0_24 = arith.constant 0 : index
    %c0_25 = arith.constant 0 : index
    %c0_26 = arith.constant 0 : index
    %29 = vector.load %arg10[%c0_24, %c0_25, %c0_26] : memref<4x8x32xf32, #tpu.memory_space<vmem>>, vector<4x8x32xf32>
    tpu.vector_store %arg10[%c0_24, %c0_25, %c0_26], %28 {strides = array<i32>} : memref<4x8x32xf32, #tpu.memory_space<vmem>>, vector<4x8x32xf32>,
    %c0_27 = arith.constant 0 : index
    %c0_28 = arith.constant 0 : index
    %c0_29 = arith.constant 0 : index
    %30 = vector.load %arg8[%c0_27, %c0_28, %c0_29] : memref<4x8x1xf32, #tpu.memory_space<vmem>>, vector<4x8x1xf32>
    tpu.vector_store %arg8[%c0_27, %c0_28, %c0_29], %9 {strides = array<i32>} : memref<4x8x1xf32, #tpu.memory_space<vmem>>, vector<4x8x1xf32>,
    %c0_i32_30 = arith.constant 0 : i32
    %31 = arith.cmpi eq, %arg2, %c0_i32_30 : i32
    %32 = arith.extui %31 : i1 to i32
    %c0_i32_31 = arith.constant 0 : i32
    %33 = arith.cmpi ne, %32, %c0_i32_31 : i32
    scf.if %33 {
      %c0_32 = arith.constant 0 : index
      %c0_33 = arith.constant 0 : index
      %c0_34 = arith.constant 0 : index
      %34 = vector.load %arg10[%c0_32, %c0_33, %c0_34] : memref<4x8x32xf32, #tpu.memory_space<vmem>>, vector<4x8x32xf32>
      %c0_35 = arith.constant 0 : index
      %c0_36 = arith.constant 0 : index
      %c0_37 = arith.constant 0 : index
      %35 = vector.load %arg9[%c0_35, %c0_36, %c0_37] : memref<4x8x1xf32, #tpu.memory_space<vmem>>, vector<4x8x1xf32>
      %36 = vector.broadcast %35 : vector<4x8x1xf32> to vector<4x8x32xf32>
      %37 = arith.divf %34, %36 : vector<4x8x32xf32>
      %c0_38 = arith.constant 0 : index
      %c0_39 = arith.constant 0 : index
      %c0_40 = arith.constant 0 : index
      %38 = vector.load %arg6[%c0_38, %c0_39, %c0_40] : memref<4x8x32xf32, #tpu.memory_space<vmem>>, vector<4x8x32xf32>
      tpu.vector_store %arg6[%c0_38, %c0_39, %c0_40], %37 {strides = array<i32>} : memref<4x8x32xf32, #tpu.memory_space<vmem>>, vector<4x8x32xf32>,
    } else {
    }
    return
  }
  func.func @transform_0(%arg0: i32, %arg1: i32, %arg2: i32) -> (i32, i32, i32) {
    %c0_i32 = arith.constant 0 : i32
    %c0_i32_0 = arith.constant 0 : i32
    return %arg0, %arg1, %c0_i32 : i32, i32, i32
  }
  func.func @transform_1(%arg0: i32, %arg1: i32, %arg2: i32) -> (i32, i32, i32) {
    %c0_i32 = arith.constant 0 : i32
    %c0_i32_0 = arith.constant 0 : i32
    return %arg0, %arg2, %c0_i32 : i32, i32, i32
  }
  func.func @transform_2(%arg0: i32, %arg1: i32, %arg2: i32) -> (i32, i32, i32) {
    %c0_i32 = arith.constant 0 : i32
    %c0_i32_0 = arith.constant 0 : i32
    return %arg0, %arg2, %c0_i32 : i32, i32, i32
  }
  func.func @transform_3(%arg0: i32, %arg1: i32, %arg2: i32) -> (i32, i32, i32) {
    %c0_i32 = arith.constant 0 : i32
    %c0_i32_0 = arith.constant 0 : i32
    return %arg0, %arg1, %c0_i32 : i32, i32, i32
  }
}

</mosaic_0001>

<llo_original>
// kernel: tpu_custom_call.1
$region0: #{tpu_custom_call.1}
  #allocation0 [shape = 'u32[]', space=smem, size = 0x4, offset = 0x4, fixed_abs, tag = 'smem constant byte address 0x4 - core index']
  #allocation1 [shape = 'u32[72,128]{1,0:T(1,128)}', space=vmem, size = 0x9000, scoped, tag = 'internal scratch']
  #allocation2 [shape = 'bf16[4,8,32]{2,1,0:T(8,128)(2,1)}', space=vmem, size = 0x2000, scoped, tag = 'scratch operand']
  #allocation3 [shape = 'f32[4,8,1]{2,1,0:T(8,128)}', space=vmem, size = 0x4000, scoped, tag = 'scratch operand']
  #allocation4 [shape = 'f32[4,8,1]{2,1,0:T(8,128)}', space=vmem, size = 0x4000, scoped, tag = 'scratch operand']
  #allocation5 [shape = 'f32[4,8,32]{2,1,0:T(8,128)}', space=vmem, size = 0x4000, scoped, tag = 'scratch operand']
  %s0 = inlined_call_operand.hbm [shape: bf16[8,8,32], index: 0, kind: input, shape index: {}]
  %s1 = inlined_call_operand.hbm [shape: bf16[8,8,32], index: 1, kind: input, shape index: {}]
  %s2 = inlined_call_operand.hbm [shape: bf16[8,8,32], index: 2, kind: input, shape index: {}]
  %s3 = inlined_call_operand.hbm [shape: f32[8,8,32], index: 3, kind: output, shape index: {}]
  %s4 = sld [smem:[#allocation0]]
  $region65: #{tpu_custom_call.1} parent=0
    _
  %s6 = ssub.s32 1, %s4
  %s7 = scalar_select 0, %s6, %s4
  $region1: #{tpu_custom_call.1} parent=0
    #allocation6 [shape = 'u8[16384]{0}', space=vmem, size = 0x4000, scoped, tag = 'input window, operand 0']
    #allocation7 [shape = 's32[2]{0}', space=sflag, size = 0x8, scoped, tag = 'scoped memory for tpu_custom_call.1']
    #allocation8 [shape = 's32[2]{0}', space=sflag, size = 0x8, scoped, tag = 'scoped memory for tpu_custom_call.1']
    #allocation9 [shape = 'u8[16384]{0}', space=vmem, size = 0x4000, scoped, tag = 'input window, operand 1']
    #allocation10 [shape = 's32[2]{0}', space=sflag, size = 0x8, scoped, tag = 'scoped memory for tpu_custom_call.1']
    #allocation11 [shape = 'u8[16384]{0}', space=vmem, size = 0x4000, scoped, tag = 'input window, operand 2']
    #allocation12 [shape = 'u8[32768]{0}', space=vmem, size = 0x8000, scoped, tag = 'output window, operand 0']
    %8 = vsyncpa [#allocation7], 0
    %s9 = scalar_lea.sflag [#allocation7], 1
    %10 = vsyncpa %s9, 0
    %11 = vsyncpa [#allocation10], 0
    %s12 = scalar_lea.sflag [#allocation10], 1
    %13 = vsyncpa %s12, 0
    %14 = vsyncpa [#allocation8], 0
    %s15 = scalar_lea.sflag [#allocation8], 1
    %16 = vsyncpa %s15, 0
    loop: start=0, step=1, limit=4
    $region2: #{tpu_custom_call.1} parent=1 // loop_pre_header
      _
    $region3: #{tpu_custom_call.1} parent=1 // loop_header
      %s18 = sphi 0, %s22
      %p19 = scmp.ge.s32.totalorder %s18, 4
      %s25 = sphi 0, %s44
      %s26 = sphi 0, %s40
      %s27 = sphi 0, %s36
      %s28 = sphi 0, %s25
      %s29 = sphi 0, %s26
      %s30 = sphi 0, %s27
      %s31 = sphi 0, %s28
      %s32 = sphi 0, %s29
      %s33 = sphi 0, %s30
      %s49 = sphi 0, %s51
      %s52 = sphi 0, %s49
      %s53 = sphi 0, %s52
      %s69 = sphi 0, %s53
      %s77 = sphi 0, %s79
      %s80 = sphi 0, %s77
      %s81 = sphi 0, %s80
      %s97 = sphi 0, %s81
      %s105 = sphi 0, %s107
      %s108 = sphi 0, %s105
      %s109 = sphi 0, %s108
      %s125 = sphi 0, %s109
      %s133 = sphi 0, %s135
      %s136 = sphi 0, %s133
      %s137 = sphi 0, %s136
      %s153 = sphi 0, %s137
    $region4: #{tpu_custom_call.1} parent=1 // loop_header_branch
      %21 = sbr.rel (%p19) target = $region8
    $region5: #{tpu_custom_call.1} parent=1 // loop_body
      %s23 = ssub.s32 %s18, 1
      %s24 = ssub.s32 %s18, 2
      %s34 = sadd.s32 1, %s27
      %p35 = scmp.ge.s32.totalorder %s34, 1
      %s36 = scalar_select %p35, 0, %s34
      %s37 = sadd.s32 1, %s26
      %s38 = scalar_select %p35, %s37, %s26
      %p39 = scmp.ge.s32.totalorder %s38, 1
      %s40 = scalar_select %p39, 0, %s38
      %s41 = sadd.s32 1, %s25
      %s42 = scalar_select %p39, %s41, %s25
      %p43 = scmp.ge.s32.totalorder %s42, 2
      %s44 = scalar_select %p43, 0, %s42
      %s45 = ssub.s32 %s25, %s44
      %s46 = ssub.s32 %s26, %s40
      %s47 = sor.u32 %s45, %s46
      %p48 = scmp.eq.s32.totalorder %s47, 0
      %s50 = sadd.s32 %s49, 1
      %s51 = scalar_select %p48, %s49, %s50
      %p54 = pneg %p48
      %p55 = scmp.eq.s32.totalorder %s18, 1
      %p56 = por %p54, %p55
      %p57 = scmp.ne.s32.totalorder %s49, %s52
      %p58 = scmp.eq.s32.totalorder %s18, 0
      %p59 = por %p57, %p58
      %p60 = scmp.ne.s32.totalorder %s49, %s52
      %p61 = scmp.eq.s32.totalorder %s23, 1
      %p62 = por %p60, %p61
      %p63 = scmp.ne.s32.totalorder %s52, %s53
      %p64 = scmp.eq.s32.totalorder %s23, 0
      %p65 = por %p63, %p64
      %p66 = scmp.ne.s32.totalorder %s52, %s53
      %p67 = scmp.eq.s32.totalorder %s24, 1
      %p68 = por %p66, %p67
      %p70 = scmp.ne.s32.totalorder %s53, %s69
      %p71 = scmp.eq.s32.totalorder %s24, 0
      %p72 = por %p70, %p71
      %s73 = ssub.s32 %s25, %s44
      %s74 = ssub.s32 %s27, %s36
      %s75 = sor.u32 %s73, %s74
      %p76 = scmp.eq.s32.totalorder %s75, 0
      %s78 = sadd.s32 %s77, 1
      %s79 = scalar_select %p76, %s77, %s78
      %p82 = pneg %p76
      %p83 = scmp.eq.s32.totalorder %s18, 1
      %p84 = por %p82, %p83
      %p85 = scmp.ne.s32.totalorder %s77, %s80
      %p86 = scmp.eq.s32.totalorder %s18, 0
      %p87 = por %p85, %p86
      %p88 = scmp.ne.s32.totalorder %s77, %s80
      %p89 = scmp.eq.s32.totalorder %s23, 1
      %p90 = por %p88, %p89
      %p91 = scmp.ne.s32.totalorder %s80, %s81
      %p92 = scmp.eq.s32.totalorder %s23, 0
      %p93 = por %p91, %p92
      %p94 = scmp.ne.s32.totalorder %s80, %s81
      %p95 = scmp.eq.s32.totalorder %s24, 1
      %p96 = por %p94, %p95
      %p98 = scmp.ne.s32.totalorder %s81, %s97
      %p99 = scmp.eq.s32.totalorder %s24, 0
      %p100 = por %p98, %p99
      %s101 = ssub.s32 %s25, %s44
      %s102 = ssub.s32 %s27, %s36
      %s103 = sor.u32 %s101, %s102
      %p104 = scmp.eq.s32.totalorder %s103, 0
      %s106 = sadd.s32 %s105, 1
      %s107 = scalar_select %p104, %s105, %s106
      %p110 = pneg %p104
      %p111 = scmp.eq.s32.totalorder %s18, 1
      %p112 = por %p110, %p111
      %p113 = scmp.ne.s32.totalorder %s105, %s108
      %p114 = scmp.eq.s32.totalorder %s18, 0
      %p115 = por %p113, %p114
      %p116 = scmp.ne.s32.totalorder %s105, %s108
      %p117 = scmp.eq.s32.totalorder %s23, 1
      %p118 = por %p116, %p117
      %p119 = scmp.ne.s32.totalorder %s108, %s109
      %p120 = scmp.eq.s32.totalorder %s23, 0
      %p121 = por %p119, %p120
      %p122 = scmp.ne.s32.totalorder %s108, %s109
      %p123 = scmp.eq.s32.totalorder %s24, 1
      %p124 = por %p122, %p123
      %p126 = scmp.ne.s32.totalorder %s109, %s125
      %p127 = scmp.eq.s32.totalorder %s24, 0
      %p128 = por %p126, %p127
      %s129 = ssub.s32 %s25, %s44
      %s130 = ssub.s32 %s26, %s40
      %s131 = sor.u32 %s129, %s130
      %p132 = scmp.eq.s32.totalorder %s131, 0
      %s134 = sadd.s32 %s133, 1
      %s135 = scalar_select %p132, %s133, %s134
      %p138 = pneg %p132
      %p139 = scmp.eq.s32.totalorder %s18, 1
      %p140 = por %p138, %p139
      %p141 = scmp.ne.s32.totalorder %s133, %s136
      %p142 = scmp.eq.s32.totalorder %s18, 0
      %p143 = por %p141, %p142
      %p144 = scmp.ne.s32.totalorder %s133, %s136
      %p145 = scmp.eq.s32.totalorder %s23, 1
      %p146 = por %p144, %p145
      %p147 = scmp.ne.s32.totalorder %s136, %s137
      %p148 = scmp.eq.s32.totalorder %s23, 0
      %p149 = por %p147, %p148
      %p150 = scmp.ne.s32.totalorder %s136, %s137
      %p151 = scmp.eq.s32.totalorder %s24, 1
      %p152 = por %p150, %p151
      %p154 = scmp.ne.s32.totalorder %s137, %s153
      %p155 = scmp.eq.s32.totalorder %s24, 0
      %p156 = por %p154, %p155
      %p157 = scmp.le.s32.totalorder 1, %s18
      %p158 = scmp.lt.s32.totalorder %s18, 3
      %p159 = pnand %p157, %p158
      %p160 = pneg %p159
      // Predicated region
      $region9: #{tpu_custom_call.1} parent=5 // pred_check
        _
      $region10: #{tpu_custom_call.1} parent=5 // pred_check_branch
        %162 = sbr.rel (%p159) target = $region12
      $region11: #{tpu_custom_call.1} parent=5 // pred_region
        %s163 = ssub.s32 %s18, 1
      $region12: #{tpu_custom_call.1} parent=5 // pred_fallthru
        _
      %p164 = scmp.lt.s32.totalorder %s18, 2
      // Predicated region
      $region13: #{tpu_custom_call.1} parent=5 // pred_check
        %p165 = pneg %p164
      $region14: #{tpu_custom_call.1} parent=5 // pred_check_branch
        %167 = sbr.rel (%p165) target = $region16
      $region15: #{tpu_custom_call.1} parent=5 // pred_region
        // Predicated region
        $region17: #{tpu_custom_call.1} parent=15 // pred_check
          %p168 = pneg %p59
        $region18: #{tpu_custom_call.1} parent=15 // pred_check_branch
          %170 = sbr.rel (%p168) target = $region20
        $region19: #{tpu_custom_call.1} parent=15 // pred_region
          %s171 = sand.u32 %s49, 1
          %s172 = scalar_lea.sflag [#allocation7], %s171
          %s173 = sand.u32 %s49, 1
          %s174 = smul.addr %s173, 16
          %s175 = scalar_lea.vmem [#allocation6], %s174
          %s176 = smul.u32 4, %s25
          %178 = vsyncadd %s172, 0
          %s179 = sadd.s32 %s26, %s176
          %s180 = smul.addr %s179, 4
          %s181 = scalar_lea.hbm %s0, %s180
          %s182 = sshll.u32 %s181, 4
          %s183 = int_to_ptr.hbm [resolvable:$true] %s182
          %s184 = sshll.u32 %s175, 4
          %s185 = int_to_ptr.vmem [resolvable:$true] %s184
          %190 = dma.hbm_to_vmem [thread:$0]  %s183, 256, %s185, %s172, 64, 64, 4
        $region20: #{tpu_custom_call.1} parent=15 // pred_fallthru
          _
        // Predicated region
        $region21: #{tpu_custom_call.1} parent=15 // pred_check
          %p191 = pneg %p87
        $region22: #{tpu_custom_call.1} parent=15 // pred_check_branch
          %193 = sbr.rel (%p191) target = $region24
        $region23: #{tpu_custom_call.1} parent=15 // pred_region
          %s194 = sand.u32 %s18, 1
          %s195 = scalar_lea.sflag [#allocation10], %s194
          %s196 = sand.u32 %s77, 1
          %s197 = smul.addr %s196, 16
          %s198 = scalar_lea.vmem [#allocation9], %s197
          %s199 = smul.u32 4, %s25
          %201 = vsyncadd %s195, 0
          %s202 = sadd.s32 %s27, %s199
          %s203 = smul.addr %s202, 4
          %s204 = scalar_lea.hbm %s1, %s203
          %s205 = sshll.u32 %s204, 4
          %s206 = int_to_ptr.hbm [resolvable:$true] %s205
          %s207 = sshll.u32 %s198, 4
          %s208 = int_to_ptr.vmem [resolvable:$true] %s207
          %213 = dma.hbm_to_vmem [thread:$0]  %s206, 256, %s208, %s195, 64, 64, 4
        $region24: #{tpu_custom_call.1} parent=15 // pred_fallthru
          _
        // Predicated region
        $region25: #{tpu_custom_call.1} parent=15 // pred_check
          %p214 = pneg %p115
        $region26: #{tpu_custom_call.1} parent=15 // pred_check_branch
          %216 = sbr.rel (%p214) target = $region28
        $region27: #{tpu_custom_call.1} parent=15 // pred_region
          %s217 = sand.u32 %s18, 1
          %s218 = scalar_lea.sflag [#allocation10], %s217
          %s219 = sand.u32 %s105, 1
          %s220 = smul.addr %s219, 16
          %s221 = scalar_lea.vmem [#allocation11], %s220
          %s222 = smul.u32 4, %s25
          %224 = vsyncadd %s218, 0
          %s225 = sadd.s32 %s27, %s222
          %s226 = smul.addr %s225, 4
          %s227 = scalar_lea.hbm %s2, %s226
          %s228 = sshll.u32 %s227, 4
          %s229 = int_to_ptr.hbm [resolvable:$true] %s228
          %s230 = sshll.u32 %s221, 4
          %s231 = int_to_ptr.vmem [resolvable:$true] %s230
          %236 = dma.hbm_to_vmem [thread:$0]  %s229, 256, %s231, %s218, 64, 64, 4
        $region28: #{tpu_custom_call.1} parent=15 // pred_fallthru
          _
      $region16: #{tpu_custom_call.1} parent=5 // pred_fallthru
        _
      %p237 = scmp.le.s32.totalorder 1, %s18
      %p238 = scmp.lt.s32.totalorder %s18, 3
      %p239 = pnand %p237, %p238
      %p240 = pneg %p239
      // Predicated region
      $region29: #{tpu_custom_call.1} parent=5 // pred_check
        _
      $region30: #{tpu_custom_call.1} parent=5 // pred_check_branch
        %242 = sbr.rel (%p239) target = $region32
      $region31: #{tpu_custom_call.1} parent=5 // pred_region
        %s243 = ssub.s32 %s18, 1
        %s244 = sand.u32 %s52, 1
        %s245 = scalar_lea.sflag [#allocation7], %s244
        %s246 = sand.u32 %s52, 1
        %s247 = smul.addr %s246, 16
        %s248 = scalar_lea.vmem [#allocation6], %s247
        // Predicated region
        $region33: #{tpu_custom_call.1} parent=31 // pred_check
          %p249 = pneg %p65
        $region34: #{tpu_custom_call.1} parent=31 // pred_check_branch
          %251 = sbr.rel (%p249) target = $region36
        $region35: #{tpu_custom_call.1} parent=31 // pred_region
          %253 = dma.done %s245, 256
        $region36: #{tpu_custom_call.1} parent=31 // pred_fallthru
          _
        %s254 = sand.u32 %s23, 1
        %s255 = scalar_lea.sflag [#allocation10], %s254
        %s256 = sand.u32 %s80, 1
        %s257 = smul.addr %s256, 16
        %s258 = scalar_lea.vmem [#allocation9], %s257
        // Predicated region
        $region37: #{tpu_custom_call.1} parent=31 // pred_check
          %p259 = pneg %p93
        $region38: #{tpu_custom_call.1} parent=31 // pred_check_branch
          %261 = sbr.rel (%p259) target = $region40
        $region39: #{tpu_custom_call.1} parent=31 // pred_region
          %263 = dma.done %s255, 256
        $region40: #{tpu_custom_call.1} parent=31 // pred_fallthru
          _
        %s264 = sand.u32 %s23, 1
        %s265 = scalar_lea.sflag [#allocation10], %s264
        %s266 = sand.u32 %s108, 1
        %s267 = smul.addr %s266, 16
        %s268 = scalar_lea.vmem [#allocation11], %s267
        // Predicated region
        $region41: #{tpu_custom_call.1} parent=31 // pred_check
          %p269 = pneg %p121
        $region42: #{tpu_custom_call.1} parent=31 // pred_check_branch
          %271 = sbr.rel (%p269) target = $region44
        $region43: #{tpu_custom_call.1} parent=31 // pred_region
          %273 = dma.done %s265, 256
        $region44: #{tpu_custom_call.1} parent=31 // pred_fallthru
          _
        %s274 = sand.u32 %s52, 1
        %s275 = scalar_lea.sflag [#allocation7], %s274
        %s276 = sand.u32 %s52, 1
        %s277 = smul.addr %s276, 16
        %s278 = scalar_lea.vmem [#allocation6], %s277
        %p279 = pneg %p65
        %p280 = pneg %p62
        %s281 = sand.u32 %s23, 1
        %s282 = scalar_lea.sflag [#allocation10], %s281
        %s283 = sand.u32 %s80, 1
        %s284 = smul.addr %s283, 16
        %s285 = scalar_lea.vmem [#allocation9], %s284
        %p286 = pneg %p93
        %p287 = pneg %p90
        %s288 = sand.u32 %s23, 1
        %s289 = scalar_lea.sflag [#allocation10], %s288
        %s290 = sand.u32 %s108, 1
        %s291 = smul.addr %s290, 16
        %s292 = scalar_lea.vmem [#allocation11], %s291
        %p293 = pneg %p121
        %p294 = pneg %p118
        %p295 = pneg %p149
        %p296 = pneg %p146
        %s297 = sand.u32 %s136, 1
        %s298 = scalar_lea.sflag [#allocation8], %s297
        %s299 = sand.u32 %s136, 1
        %s300 = smul.addr %s299, 32
        %s301 = scalar_lea.vmem [#allocation12], %s300
        %s302 = smul.u32 4, %s28
        %s303 = smul.u32 4, %s28
        %s304 = smul.u32 4, %s28
        %s305 = smul.u32 4, %s28
        %p307 = scmp.eq.s32.totalorder %s30, 0
        // Predicated region
        $region45: #{tpu_custom_call.1} parent=31 // pred_check
          %p308 = pneg %p307
        $region46: #{tpu_custom_call.1} parent=31 // pred_check_branch
          %310 = sbr.rel (%p308) target = $region48
        $region47: #{tpu_custom_call.1} parent=31 // pred_region
          %v311 = vld [vmem:[%s248] sm:$0xf]
          %v312 = vld [vmem:[%s248 + $0x4] sm:$0xf]
          %v313 = vld [vmem:[%s248 + $0x8] sm:$0xf]
          %v314 = vld [vmem:[%s248 + $0xc] sm:$0xf]
          %v315 = vunpack.c.l.bf16 %v311
          %v316 = vunpack.c.l.bf16 %v312
          %v317 = vunpack.c.l.bf16 %v313
          %v318 = vunpack.c.l.bf16 %v314
          %v319 = vmul.f32 %v315, 0.17675781
          %v320 = vmul.f32 %v316, 0.17675781
          %v321 = vmul.f32 %v317, 0.17675781
          %v322 = vmul.f32 %v318, 0.17675781
          %v323 = vpack.c.bf16 %v319, %v319
          %v324 = vpack.c.bf16 %v320, %v320
          %v325 = vpack.c.bf16 %v321, %v321
          %v326 = vpack.c.bf16 %v322, %v322
          %vm327 = vcmask 257024
          %328 = vst.msk [vmem:[#allocation2] sm:$0xf] %vm327, %v323
          %329 = vst.msk [vmem:[#allocation2 + $0x4] sm:$0xf] %vm327, %v324
          %330 = vst.msk [vmem:[#allocation2 + $0x8] sm:$0xf] %vm327, %v325
          %331 = vst.msk [vmem:[#allocation2 + $0xc] sm:$0xf] %vm327, %v326
          %vm332 = vcmask 7168
          %333 = vst.msk [vmem:[#allocation3] sm:$0xff] %vm332, -inf
          %334 = vst.msk [vmem:[#allocation3 + $0x8] sm:$0xff] %vm332, -inf
          %335 = vst.msk [vmem:[#allocation3 + $0x10] sm:$0xff] %vm332, -inf
          %336 = vst.msk [vmem:[#allocation3 + $0x18] sm:$0xff] %vm332, -inf
          %337 = vst.msk [vmem:[#allocation4] sm:$0xff] %vm332, 0.0
          %338 = vst.msk [vmem:[#allocation4 + $0x8] sm:$0xff] %vm332, 0.0
          %339 = vst.msk [vmem:[#allocation4 + $0x10] sm:$0xff] %vm332, 0.0
          %340 = vst.msk [vmem:[#allocation4 + $0x18] sm:$0xff] %vm332, 0.0
          %vm341 = vcmask 261120
          %342 = vst.msk [vmem:[#allocation5] sm:$0xff] %vm341, 0.0
          %343 = vst.msk [vmem:[#allocation5 + $0x8] sm:$0xff] %vm341, 0.0
          %344 = vst.msk [vmem:[#allocation5 + $0x10] sm:$0xff] %vm341, 0.0
          %345 = vst.msk [vmem:[#allocation5 + $0x18] sm:$0xff] %vm341, 0.0
        $region48: #{tpu_custom_call.1} parent=31 // pred_fallthru
          _
        %v346 = vld [vmem:[#allocation2] sm:$0xf]
        %v347 = vld [vmem:[#allocation2 + $0x4] sm:$0xf]
        %v348 = vld [vmem:[#allocation2 + $0x8] sm:$0xf]
        %v349 = vld [vmem:[#allocation2 + $0xc] sm:$0xf]
        %v350 = vld [vmem:[%s258] sm:$0xf]
        %v351 = vld [vmem:[%s258 + $0x4] sm:$0xf]
        %v352 = vld [vmem:[%s258 + $0x8] sm:$0xf]
        %v353 = vld [vmem:[%s258 + $0xc] sm:$0xf]
        %vm354 = vcmask 261120
        %v356 = vsel %vm354, %v346, 0
        %v359 = vsel %vm354, %v350, 0
        %361 = vmatpush.bf16.xpose.msra.mxu0 0
        %362 = vmatpush.bf16.xpose.msra.mxu0 0
        %363 = vmatpush.bf16.xpose.msra.mxu0 0
        %364 = vmatpush.bf16.xpose.msra.mxu0 0
        %365 = vmatpush.bf16.xpose.msra.mxu0 0
        %366 = vmatpush.bf16.xpose.msra.mxu0 0
        %367 = vmatpush.bf16.xpose.msra.mxu0 0
        %368 = vmatpush.bf16.xpose.msra.mxu0 %v359
        %369 = vmatmul.bf16.gmra.mxu0 %v356
        %v370 = vpop.f32.mrf.mxu0
        %v371 = vadd.f32 0.0, %v370
        %v372 = vpop.f32.mrf.mxu0
        %373 = vdwg.mxu0
        %v375 = vsel %vm354, %v347, 0
        %v378 = vsel %vm354, %v351, 0
        %380 = vmatpush.bf16.xpose.msra.mxu0 0
        %381 = vmatpush.bf16.xpose.msra.mxu0 0
        %382 = vmatpush.bf16.xpose.msra.mxu0 0
        %383 = vmatpush.bf16.xpose.msra.mxu0 0
        %384 = vmatpush.bf16.xpose.msra.mxu0 0
        %385 = vmatpush.bf16.xpose.msra.mxu0 0
        %386 = vmatpush.bf16.xpose.msra.mxu0 0
        %387 = vmatpush.bf16.xpose.msra.mxu0 %v378
        %388 = vmatmul.bf16.gmra.mxu0 %v375
        %v389 = vpop.f32.mrf.mxu0
        %v390 = vadd.f32 0.0, %v389
        %v391 = vpop.f32.mrf.mxu0
        %392 = vdwg.mxu0
        %v394 = vsel %vm354, %v348, 0
        %v397 = vsel %vm354, %v352, 0
        %399 = vmatpush.bf16.xpose.msra.mxu0 0
        %400 = vmatpush.bf16.xpose.msra.mxu0 0
        %401 = vmatpush.bf16.xpose.msra.mxu0 0
        %402 = vmatpush.bf16.xpose.msra.mxu0 0
        %403 = vmatpush.bf16.xpose.msra.mxu0 0
        %404 = vmatpush.bf16.xpose.msra.mxu0 0
        %405 = vmatpush.bf16.xpose.msra.mxu0 0
        %406 = vmatpush.bf16.xpose.msra.mxu0 %v397
        %407 = vmatmul.bf16.gmra.mxu0 %v394
        %v408 = vpop.f32.mrf.mxu0
        %v409 = vadd.f32 0.0, %v408
        %v410 = vpop.f32.mrf.mxu0
        %411 = vdwg.mxu0
        %v413 = vsel %vm354, %v349, 0
        %v416 = vsel %vm354, %v353, 0
        %418 = vmatpush.bf16.xpose.msra.mxu0 0
        %419 = vmatpush.bf16.xpose.msra.mxu0 0
        %420 = vmatpush.bf16.xpose.msra.mxu0 0
        %421 = vmatpush.bf16.xpose.msra.mxu0 0
        %422 = vmatpush.bf16.xpose.msra.mxu0 0
        %423 = vmatpush.bf16.xpose.msra.mxu0 0
        %424 = vmatpush.bf16.xpose.msra.mxu0 0
        %425 = vmatpush.bf16.xpose.msra.mxu0 %v416
        %426 = vmatmul.bf16.gmra.mxu0 %v413
        %v427 = vpop.f32.mrf.mxu0
        %v428 = vadd.f32 0.0, %v427
        %v429 = vpop.f32.mrf.mxu0
        %430 = vdwg.mxu0
        %v431 = vld [vmem:[#allocation3] sm:$0xff]
        %v432 = vld [vmem:[#allocation3 + $0x8] sm:$0xff]
        %v433 = vld [vmem:[#allocation3 + $0x10] sm:$0xff]
        %v434 = vld [vmem:[#allocation3 + $0x18] sm:$0xff]
        %vm435 = vcmask 64512
        %v436 = vsel %vm435, %v371, -inf
        %437 = vmax.xlane.f32.xlu0 %v436
        %v438 = vpop.xlane.xlu0 %437
        %v439 = vsel %vm435, %v390, -inf
        %440 = vmax.xlane.f32.xlu0 %v439
        %v441 = vpop.xlane.xlu0 %440
        %v442 = vsel %vm435, %v409, -inf
        %443 = vmax.xlane.f32.xlu0 %v442
        %v444 = vpop.xlane.xlu0 %443
        %v445 = vsel %vm435, %v428, -inf
        %446 = vmax.xlane.f32.xlu0 %v445
        %v447 = vpop.xlane.xlu0 %446
        %v448 = vmax.f32 %v431, %v438
        %v449 = vmax.f32 %v432, %v441
        %v450 = vmax.f32 %v433, %v444
        %v451 = vmax.f32 %v434, %v447
        %v452 = vsub.f32 %v431, %v448
        %v453 = vsub.f32 %v432, %v449
        %v454 = vsub.f32 %v433, %v450
        %v455 = vsub.f32 %v434, %v451
        %v456 = vmul.f32 %v452, 1.442695
        %v457 = vpow.pop %v456
        %v458 = vmul.f32 %v453, 1.442695
        %v459 = vpow.pop %v458
        %v460 = vmul.f32 %v454, 1.442695
        %v461 = vpow.pop %v460
        %v462 = vmul.f32 %v455, 1.442695
        %v463 = vpow.pop %v462
        %465 = vset.pattern.permute.xlu0 0
        %466 = vperm.xlu0 %465, %v448
        %v467 = vpop.permute.xlu0 %466
        %470 = vset.pattern.permute.xlu0 0
        %471 = vperm.xlu0 %470, %v449
        %v472 = vpop.permute.xlu0 %471
        %475 = vset.pattern.permute.xlu0 0
        %476 = vperm.xlu0 %475, %v450
        %v477 = vpop.permute.xlu0 %476
        %480 = vset.pattern.permute.xlu0 0
        %481 = vperm.xlu0 %480, %v451
        %v482 = vpop.permute.xlu0 %481
        %v484 = vsub.f32 %v371, %v467
        %v485 = vsub.f32 %v390, %v472
        %v486 = vsub.f32 %v409, %v477
        %v487 = vsub.f32 %v428, %v482
        %v488 = vpack.c.bf16 %v484, %v484
        %v489 = vpack.c.bf16 %v485, %v485
        %v490 = vpack.c.bf16 %v486, %v486
        %v491 = vpack.c.bf16 %v487, %v487
        %v492 = vunpack.c.l.bf16 %v488
        %v493 = vunpack.c.l.bf16 %v489
        %v494 = vunpack.c.l.bf16 %v490
        %v495 = vunpack.c.l.bf16 %v491
        %v496 = vmul.f32 %v492, 1.442695
        %v497 = vpow.pop %v496
        %v498 = vmul.f32 %v493, 1.442695
        %v499 = vpow.pop %v498
        %v500 = vmul.f32 %v494, 1.442695
        %v501 = vpow.pop %v500
        %v502 = vmul.f32 %v495, 1.442695
        %v503 = vpow.pop %v502
        %v504 = vpack.c.bf16 %v497, %v497
        %v505 = vpack.c.bf16 %v499, %v499
        %v506 = vpack.c.bf16 %v501, %v501
        %v507 = vpack.c.bf16 %v503, %v503
        %v508 = vld [vmem:[#allocation4] sm:$0xff]
        %v509 = vld [vmem:[#allocation4 + $0x8] sm:$0xff]
        %v510 = vld [vmem:[#allocation4 + $0x10] sm:$0xff]
        %v511 = vld [vmem:[#allocation4 + $0x18] sm:$0xff]
        %v512 = vmul.f32 %v457, %v508
        %v513 = vmul.f32 %v459, %v509
        %v514 = vmul.f32 %v461, %v510
        %v515 = vmul.f32 %v463, %v511
        %v516 = vunpack.c.l.bf16 %v504
        %v517 = vunpack.c.l.bf16 %v505
        %v518 = vunpack.c.l.bf16 %v506
        %v519 = vunpack.c.l.bf16 %v507
        %v520 = vsel %vm435, %v516, 0.0
        %521 = vadd.xlane.f32.xlu0 %v520
        %v522 = vpop.xlane.xlu0 %521
        %v523 = vsel %vm435, %v517, 0.0
        %524 = vadd.xlane.f32.xlu0 %v523
        %v525 = vpop.xlane.xlu0 %524
        %v526 = vsel %vm435, %v518, 0.0
        %527 = vadd.xlane.f32.xlu0 %v526
        %v528 = vpop.xlane.xlu0 %527
        %v529 = vsel %vm435, %v519, 0.0
        %530 = vadd.xlane.f32.xlu0 %v529
        %v531 = vpop.xlane.xlu0 %530
        %v532 = vadd.f32 %v512, %v522
        %v533 = vadd.f32 %v513, %v525
        %v534 = vadd.f32 %v514, %v528
        %v535 = vadd.f32 %v515, %v531
        %vm536 = vcmask 7168
        %537 = vst.msk [vmem:[#allocation4] sm:$0xff] %vm536, %v532
        %538 = vst.msk [vmem:[#allocation4 + $0x8] sm:$0xff] %vm536, %v533
        %539 = vst.msk [vmem:[#allocation4 + $0x10] sm:$0xff] %vm536, %v534
        %540 = vst.msk [vmem:[#allocation4 + $0x18] sm:$0xff] %vm536, %v535
        %v541 = vld [vmem:[#allocation5] sm:$0xff]
        %v542 = vld [vmem:[#allocation5 + $0x8] sm:$0xff]
        %v543 = vld [vmem:[#allocation5 + $0x10] sm:$0xff]
        %v544 = vld [vmem:[#allocation5 + $0x18] sm:$0xff]
        %546 = vset.pattern.permute.xlu0 0
        %547 = vperm.xlu0 %546, %v457
        %v548 = vpop.permute.xlu0 %547
        %551 = vset.pattern.permute.xlu0 0
        %552 = vperm.xlu0 %551, %v459
        %v553 = vpop.permute.xlu0 %552
        %556 = vset.pattern.permute.xlu0 0
        %557 = vperm.xlu0 %556, %v461
        %v558 = vpop.permute.xlu0 %557
        %561 = vset.pattern.permute.xlu0 0
        %562 = vperm.xlu0 %561, %v463
        %v563 = vpop.permute.xlu0 %562
        %v565 = vmul.f32 %v548, %v541
        %v566 = vmul.f32 %v553, %v542
        %v567 = vmul.f32 %v558, %v543
        %v568 = vmul.f32 %v563, %v544
        %v569 = vld [vmem:[%s268] sm:$0xf]
        %v570 = vld [vmem:[%s268 + $0x4] sm:$0xf]
        %v571 = vld [vmem:[%s268 + $0x8] sm:$0xf]
        %v572 = vld [vmem:[%s268 + $0xc] sm:$0xf]
        %v574 = vsel %vm435, %v504, 0
        %vm576 = vcmask 1043456
        %v578 = vsel %vm576, %v569, 0
        %580 = vmatpush.bf16.msra.mxu0 0
        %581 = vmatpush.bf16.msra.mxu0 0
        %582 = vmatpush.bf16.msra.mxu0 0
        %583 = vmatpush.bf16.msra.mxu0 0
        %584 = vmatpush.bf16.msra.mxu0 0
        %585 = vmatpush.bf16.msra.mxu0 0
        %586 = vmatpush.bf16.msra.mxu0 0
        %587 = vmatpush.bf16.msra.mxu0 %v578
        %588 = vmatmul.bf16.gmra.mxu0 %v574
        %v589 = vpop.f32.mrf.mxu0
        %v590 = vadd.f32 0.0, %v589
        %v591 = vpop.f32.mrf.mxu0
        %592 = vdwg.mxu0
        %v594 = vsel %vm435, %v505, 0
        %v597 = vsel %vm576, %v570, 0
        %599 = vmatpush.bf16.msra.mxu0 0
        %600 = vmatpush.bf16.msra.mxu0 0
        %601 = vmatpush.bf16.msra.mxu0 0
        %602 = vmatpush.bf16.msra.mxu0 0
        %603 = vmatpush.bf16.msra.mxu0 0
        %604 = vmatpush.bf16.msra.mxu0 0
        %605 = vmatpush.bf16.msra.mxu0 0
        %606 = vmatpush.bf16.msra.mxu0 %v597
        %607 = vmatmul.bf16.gmra.mxu0 %v594
        %v608 = vpop.f32.mrf.mxu0
        %v609 = vadd.f32 0.0, %v608
        %v610 = vpop.f32.mrf.mxu0
        %611 = vdwg.mxu0
        %v613 = vsel %vm435, %v506, 0
        %v616 = vsel %vm576, %v571, 0
        %618 = vmatpush.bf16.msra.mxu0 0
        %619 = vmatpush.bf16.msra.mxu0 0
        %620 = vmatpush.bf16.msra.mxu0 0
        %621 = vmatpush.bf16.msra.mxu0 0
        %622 = vmatpush.bf16.msra.mxu0 0
        %623 = vmatpush.bf16.msra.mxu0 0
        %624 = vmatpush.bf16.msra.mxu0 0
        %625 = vmatpush.bf16.msra.mxu0 %v616
        %626 = vmatmul.bf16.gmra.mxu0 %v613
        %v627 = vpop.f32.mrf.mxu0
        %v628 = vadd.f32 0.0, %v627
        %v629 = vpop.f32.mrf.mxu0
        %630 = vdwg.mxu0
        %v632 = vsel %vm435, %v507, 0
        %v635 = vsel %vm576, %v572, 0
        %637 = vmatpush.bf16.msra.mxu0 0
        %638 = vmatpush.bf16.msra.mxu0 0
        %639 = vmatpush.bf16.msra.mxu0 0
        %640 = vmatpush.bf16.msra.mxu0 0
        %641 = vmatpush.bf16.msra.mxu0 0
        %642 = vmatpush.bf16.msra.mxu0 0
        %643 = vmatpush.bf16.msra.mxu0 0
        %644 = vmatpush.bf16.msra.mxu0 %v635
        %645 = vmatmul.bf16.gmra.mxu0 %v632
        %v646 = vpop.f32.mrf.mxu0
        %v647 = vadd.f32 0.0, %v646
        %v648 = vpop.f32.mrf.mxu0
        %649 = vdwg.mxu0
        %v650 = vadd.f32 %v565, %v590
        %v651 = vadd.f32 %v566, %v609
        %v652 = vadd.f32 %v567, %v628
        %v653 = vadd.f32 %v568, %v647
        %654 = vst.msk [vmem:[#allocation5] sm:$0xff] %vm354, %v650
        %655 = vst.msk [vmem:[#allocation5 + $0x8] sm:$0xff] %vm354, %v651
        %656 = vst.msk [vmem:[#allocation5 + $0x10] sm:$0xff] %vm354, %v652
        %657 = vst.msk [vmem:[#allocation5 + $0x18] sm:$0xff] %vm354, %v653
        %658 = vst.msk [vmem:[#allocation3] sm:$0xff] %vm536, %v448
        %659 = vst.msk [vmem:[#allocation3 + $0x8] sm:$0xff] %vm536, %v449
        %660 = vst.msk [vmem:[#allocation3 + $0x10] sm:$0xff] %vm536, %v450
        %661 = vst.msk [vmem:[#allocation3 + $0x18] sm:$0xff] %vm536, %v451
        // Predicated region
        $region49: #{tpu_custom_call.1} parent=31 // pred_check
          %p662 = pneg %p307
        $region50: #{tpu_custom_call.1} parent=31 // pred_check_branch
          %664 = sbr.rel (%p662) target = $region52
        $region51: #{tpu_custom_call.1} parent=31 // pred_region
          %v665 = vld [vmem:[#allocation5] sm:$0xff]
          %v666 = vld [vmem:[#allocation5 + $0x8] sm:$0xff]
          %v667 = vld [vmem:[#allocation5 + $0x10] sm:$0xff]
          %v668 = vld [vmem:[#allocation5 + $0x18] sm:$0xff]
          %v669 = vld [vmem:[#allocation4] sm:$0xff]
          %v670 = vld [vmem:[#allocation4 + $0x8] sm:$0xff]
          %v671 = vld [vmem:[#allocation4 + $0x10] sm:$0xff]
          %v672 = vld [vmem:[#allocation4 + $0x18] sm:$0xff]
          %674 = vset.pattern.permute.xlu0 0
          %675 = vperm.xlu0 %674, %v669
          %v676 = vpop.permute.xlu0 %675
          %679 = vset.pattern.permute.xlu0 0
          %680 = vperm.xlu0 %679, %v670
          %v681 = vpop.permute.xlu0 %680
          %684 = vset.pattern.permute.xlu0 0
          %685 = vperm.xlu0 %684, %v671
          %v686 = vpop.permute.xlu0 %685
          %689 = vset.pattern.permute.xlu0 0
          %690 = vperm.xlu0 %689, %v672
          %v691 = vpop.permute.xlu0 %690
          %v693 = vrcp.pop %v676
          %v694 = vmul.f32 %v676, %v693
          %v695 = vsub.f32 1.0, %v694
          %v696 = vmul.f32 %v693, %v695
          %v697 = vadd.f32 %v693, %v696
          %vm698 = vweird.f32 %v676
          %vm699 = vweird.f32 %v693
          %vm700 = vmor %vm698, %vm699
          %v701 = vsel %vm700, %v693, %v697
          %v702 = vand.u32 2147483647, %v676
          %vm703 = vcmp.eq.f32.partialorder %v702, 8.507059e+37
          %v704 = vand.u32 %v676, 2147483648
          %v705 = vor.u32 1.1754944e-38, %v704
          %v706 = vsel %vm703, %v705, %v701
          %v707 = vmul.f32 %v665, %v706
          %v708 = vrcp.pop %v681
          %v709 = vmul.f32 %v681, %v708
          %v710 = vsub.f32 1.0, %v709
          %v711 = vmul.f32 %v708, %v710
          %v712 = vadd.f32 %v708, %v711
          %vm713 = vweird.f32 %v681
          %vm714 = vweird.f32 %v708
          %vm715 = vmor %vm713, %vm714
          %v716 = vsel %vm715, %v708, %v712
          %v717 = vand.u32 2147483647, %v681
          %vm718 = vcmp.eq.f32.partialorder %v717, 8.507059e+37
          %v719 = vand.u32 %v681, 2147483648
          %v720 = vor.u32 1.1754944e-38, %v719
          %v721 = vsel %vm718, %v720, %v716
          %v722 = vmul.f32 %v666, %v721
          %v723 = vrcp.pop %v686
          %v724 = vmul.f32 %v686, %v723
          %v725 = vsub.f32 1.0, %v724
          %v726 = vmul.f32 %v723, %v725
          %v727 = vadd.f32 %v723, %v726
          %vm728 = vweird.f32 %v686
          %vm729 = vweird.f32 %v723
          %vm730 = vmor %vm728, %vm729
          %v731 = vsel %vm730, %v723, %v727
          %v732 = vand.u32 2147483647, %v686
          %vm733 = vcmp.eq.f32.partialorder %v732, 8.507059e+37
          %v734 = vand.u32 %v686, 2147483648
          %v735 = vor.u32 1.1754944e-38, %v734
          %v736 = vsel %vm733, %v735, %v731
          %v737 = vmul.f32 %v667, %v736
          %v738 = vrcp.pop %v691
          %v739 = vmul.f32 %v691, %v738
          %v740 = vsub.f32 1.0, %v739
          %v741 = vmul.f32 %v738, %v740
          %v742 = vadd.f32 %v738, %v741
          %vm743 = vweird.f32 %v691
          %vm744 = vweird.f32 %v738
          %vm745 = vmor %vm743, %vm744
          %v746 = vsel %vm745, %v738, %v742
          %v747 = vand.u32 2147483647, %v691
          %vm748 = vcmp.eq.f32.partialorder %v747, 8.507059e+37
          %v749 = vand.u32 %v691, 2147483648
          %v750 = vor.u32 1.1754944e-38, %v749
          %v751 = vsel %vm748, %v750, %v746
          %v752 = vmul.f32 %v668, %v751
          %753 = vst.msk [vmem:[%s301] sm:$0xff] %vm354, %v707
          %754 = vst.msk [vmem:[%s301 + $0x8] sm:$0xff] %vm354, %v722
          %755 = vst.msk [vmem:[%s301 + $0x10] sm:$0xff] %vm354, %v737
          %756 = vst.msk [vmem:[%s301 + $0x18] sm:$0xff] %vm354, %v752
        $region52: #{tpu_custom_call.1} parent=31 // pred_fallthru
          _
        %s757 = sand.u32 %s136, 1
        %s758 = scalar_lea.sflag [#allocation8], %s757
        %s759 = sand.u32 %s136, 1
        %s760 = smul.addr %s759, 32
        %s761 = scalar_lea.vmem [#allocation12], %s760
        // Predicated region
        $region53: #{tpu_custom_call.1} parent=31 // pred_check
          %p762 = pneg %p146
        $region54: #{tpu_custom_call.1} parent=31 // pred_check_branch
          %764 = sbr.rel (%p762) target = $region56
        $region55: #{tpu_custom_call.1} parent=31 // pred_region
          %s765 = smul.u32 4, %s28
          %767 = vsyncadd %s758, 0
          %s768 = sadd.s32 %s29, %s765
          %s769 = smul.addr %s768, 8
          %s770 = scalar_lea.hbm %s3, %s769
          %s771 = sshll.u32 %s761, 4
          %s772 = int_to_ptr.vmem [resolvable:$true] %s771
          %s773 = sshll.u32 %s770, 4
          %s774 = int_to_ptr.hbm [resolvable:$true] %s773
          %779 = dma.vmem_to_hbm [thread:$0]  %s772, 512, %s774, %s758, 128, 128, 8
        $region56: #{tpu_custom_call.1} parent=31 // pred_fallthru
          _
      $region32: #{tpu_custom_call.1} parent=5 // pred_fallthru
        _
      %p780 = scmp.le.s32.totalorder 2, %s18
      // Predicated region
      $region57: #{tpu_custom_call.1} parent=5 // pred_check
        %p781 = pneg %p780
      $region58: #{tpu_custom_call.1} parent=5 // pred_check_branch
        %783 = sbr.rel (%p781) target = $region60
      $region59: #{tpu_custom_call.1} parent=5 // pred_region
        %s784 = ssub.s32 %s18, 2
        // Predicated region
        $region61: #{tpu_custom_call.1} parent=59 // pred_check
          %p785 = pneg %p152
        $region62: #{tpu_custom_call.1} parent=59 // pred_check_branch
          %787 = sbr.rel (%p785) target = $region64
        $region63: #{tpu_custom_call.1} parent=59 // pred_region
          %s788 = sand.u32 %s137, 1
          %s789 = scalar_lea.sflag [#allocation8], %s788
          %s790 = sand.u32 %s137, 1
          %s791 = smul.addr %s790, 32
          %s792 = scalar_lea.vmem [#allocation12], %s791
          %794 = dma.done %s789, 512
        $region64: #{tpu_custom_call.1} parent=59 // pred_fallthru
          _
      $region60: #{tpu_custom_call.1} parent=5 // pred_fallthru
        _
    $region6: #{tpu_custom_call.1} parent=1 // loop_footer
      %s22 = sadd.s32 1, %s18
    $region7: #{tpu_custom_call.1} parent=1 // loop_footer_branch
      %17 = sbr.rel target = $region3
    $region8: #{tpu_custom_call.1} parent=1 // loop_exit
      _
    %795 = vsyncpa [#allocation7], 1
    %s796 = scalar_lea.sflag [#allocation7], 1
    %797 = vsyncpa %s796, 1
    %798 = vsyncpa [#allocation10], 1
    %s799 = scalar_lea.sflag [#allocation10], 1
    %800 = vsyncpa %s799, 1
    %801 = vsyncpa [#allocation8], 1
    %s802 = scalar_lea.sflag [#allocation8], 1
    %803 = vsyncpa %s802, 1

</llo_original>
